<compile_context>
chip_gen: v7x
topology: tpu7x:2x2x1
jax: 0.10.0
libtpu: 0.0.40
codegen_flags: <defaults>
</compile_context>

<pallas_src>
import functools

import jax
import jax.numpy as jnp
from jax.experimental import pallas as pl
from jax.experimental.pallas import tpu as pltpu

_L = 128        # lane width; every packed weight block is [_L, _L]
_B_TILE = 8     # batch rows per grid step (Bt * N = 128 rows for N = 16)


# ----------------------------------------------------------------------------
# Kernel: one batch tile per grid step.  All hot-path math (4 GCN matmuls,
# 3 fused head matmuls, masked log-softmax, tanh) lives inside.
# ----------------------------------------------------------------------------
def _pvnet_kernel(feat_ref, adj_ref, w_ref, b_ref, out_ref, xpad_ref, *, n_nodes):
    Bt, N, F = feat_ref.shape
    L = out_ref.shape[-1]
    R = Bt * N

    # --- zero-extend features F -> L lanes entirely in VMEM (no HBM pad) ---
    @pl.when(pl.program_id(0) == 0)
    def _():
        xpad_ref[...] = jnp.zeros_like(xpad_ref)   # lanes F:L stay zero forever

    xpad_ref[:, 0:F] = feat_ref[...].reshape(R, F)
    x = xpad_ref[...].astype(jnp.bfloat16)         # bf16 MXU operand

    adj_bd = adj_ref[...]                          # [R, R] bf16 block-diag adj

    # --- GCN layer 1: relu((A @ x) @ W1 + b1) ---
    ax = jnp.dot(adj_bd, x, preferred_element_type=jnp.float32)
    h = jnp.dot(ax.astype(jnp.bfloat16), w_ref[0 * L:1 * L, :],
                preferred_element_type=jnp.float32) + b_ref[0:1, :]
    h = jnp.maximum(h, 0.0)                        # dropout == identity at inference

    # --- GCN layer 2: (A @ h) @ W2 + b2 ---
    ah = jnp.dot(adj_bd, h.astype(jnp.bfloat16), preferred_element_type=jnp.float32)
    h2 = jnp.dot(ah.astype(jnp.bfloat16), w_ref[1 * L:2 * L, :],
                 preferred_element_type=jnp.float32) + b_ref[1:2, :]

    # --- graph embedding: mean-pool over nodes (f32) ---
    g = jnp.mean(h2.reshape(Bt, N, L), axis=1)     # [Bt, L]

    # --- fused policy + value heads (weight slices sunk to their dots) ---
    z = jnp.dot(g.astype(jnp.bfloat16), w_ref[2 * L:3 * L, :],
                preferred_element_type=jnp.float32) + b_ref[2:3, :]
    z = jnp.maximum(z, 0.0)
    z = jnp.dot(z.astype(jnp.bfloat16), w_ref[3 * L:4 * L, :],
                preferred_element_type=jnp.float32) + b_ref[3:4, :]
    z = jnp.maximum(z, 0.0)
    z = jnp.dot(z.astype(jnp.bfloat16), w_ref[4 * L:5 * L, :],
                preferred_element_type=jnp.float32) + b_ref[4:5, :]   # [Bt, L]

    # cols 0:N -> policy logits, col N -> raw value, cols > N -> zero padding
    col = jax.lax.broadcasted_iota(jnp.int32, z.shape, 1)
    is_logit = col < n_nodes
    zm = jnp.where(is_logit, z, -jnp.inf)
    m = jnp.max(zm, axis=-1, keepdims=True)
    p = jnp.exp(zm - m)                            # padded cols -> exactly 0
    lse = jnp.log(jnp.sum(p, axis=-1, keepdims=True)) + m
    log_probs = z - lse                            # stable log-softmax (f32)
    val = jnp.tanh(jnp.sum(jnp.where(col == n_nodes, z, 0.0),
                           axis=-1, keepdims=True))        # [Bt, 1]

    out_ref[...] = jnp.where(is_logit, log_probs,
                             jnp.where(col == n_nodes, val, 0.0))


# ----------------------------------------------------------------------------
# Parameter packing: 16 small tensors -> bf16 [640, 128] weight slab + f32
# [8, 128] bias slab.
# ----------------------------------------------------------------------------
def _pad_block(w, r0=0, c0=0):
    blk = jnp.zeros((_L, _L), jnp.float32)
    return blk.at[r0:r0 + w.shape[0], c0:c0 + w.shape[1]].set(w)


def pack_params(p, inner_dim, node_num):
    D, N = inner_dim, node_num
    F, H = p["gc1_w"].shape
    assert F <= _L and H <= _L and 2 * D <= _L and N + 1 <= _L, \
        "config too large for 128-lane packing"

    w_gc1 = _pad_block(p["gc1_w"])
    w_gc2 = _pad_block(p["gc2_w"])
    w_fc1 = _pad_block(jnp.concatenate([p["act_fc1_w"], p["val_fc1_w"]], axis=1))
    w_fc2 = _pad_block(p["act_fc2_w"]) + _pad_block(p["val_fc2_w"], r0=D, c0=D)
    w_fc3 = _pad_block(p["act_fc3_w"]) + _pad_block(p["val_fc3_w"], r0=D, c0=N)
    w_slab = jnp.concatenate([w_gc1, w_gc2, w_fc1, w_fc2, w_fc3],
                             axis=0).astype(jnp.bfloat16)        # [640, 128] bf16

    b = jnp.zeros((8, _L), jnp.float32)
    b = b.at[0, :H].set(p["gc1_b"][0])
    b = b.at[1, :H].set(p["gc2_b"][0])
    b = b.at[2, :D].set(p["act_fc1_b"][0])
    b = b.at[2, D:2 * D].set(p["val_fc1_b"][0])
    b = b.at[3, :D].set(p["act_fc2_b"][0])
    b = b.at[3, D:2 * D].set(p["val_fc2_b"][0])
    b = b.at[4, :N].set(p["act_fc3_b"][0])
    b = b.at[4, N].set(p["val_fc3_b"][0, 0])
    return w_slab, b                                             # ([640,128]bf16, [8,128]f32)


# ----------------------------------------------------------------------------
# Wrapper: grid over batch tiles; per-tile block-diagonal adjacency so each
# GCN layer is a single large MXU matmul.
# ----------------------------------------------------------------------------
def policy_value_forward(features, adj, w_slab, b_slab, *, b_tile=_B_TILE):
    B, N, F = features.shape
    assert F <= _L and N + 1 <= _L
    nt = pl.cdiv(B, b_tile)
    B_pad = nt * b_tile

    feats = features.astype(jnp.float32)
    adjf = adj.astype(jnp.float32)
    if B_pad != B:
        feats = jnp.pad(feats, ((0, B_pad - B), (0, 0), (0, 0)))
        adjf = jnp.pad(adjf, ((0, B_pad - B), (0, 0), (0, 0)))

    # Fold the batch dim: per-tile block-diagonal adjacency (bf16 MXU operand).
    R = b_tile * N
    eye = jnp.eye(b_tile, dtype=jnp.float32)
    adj_bd = jnp.einsum("tbij,bc->tbicj", adjf.reshape(nt, b_tile, N, N), eye)
    adj_bd = adj_bd.reshape(nt * R, R).astype(jnp.bfloat16)      # [nt*R, R]

    Rw = w_slab.shape[0]
    flops = nt * (4 * R * R * _L + 4 * R * _L * _L + 6 * b_tile * _L * _L)
    bytes_accessed = (feats.size * 4 + adj_bd.size * 2 + w_slab.size * 2
                      + b_slab.size * 4 + B_pad * _L * 4)
    transcendentals = nt * b_tile * (_L + 2)

    out = pl.pallas_call(
        functools.partial(_pvnet_kernel, n_nodes=N),
        out_shape=jax.ShapeDtypeStruct((B_pad, _L), jnp.float32),
        grid_spec=pltpu.PrefetchScalarGridSpec(
            num_scalar_prefetch=0,
            grid=(nt,),
            in_specs=[
                pl.BlockSpec((b_tile, N, F), lambda i: (i, 0, 0)),  # raw features
                pl.BlockSpec((R, R), lambda i: (i, 0)),             # block-diag adj (bf16)
                pl.BlockSpec((Rw, _L), lambda i: (0, 0)),            # weight slab, resident
                pl.BlockSpec((8, _L), lambda i: (0, 0)),             # bias slab, resident
            ],
            out_specs=pl.BlockSpec((b_tile, _L), lambda i: (i, 0)),  # lane/sublane-dense
            scratch_shapes=[pltpu.VMEM((R, _L), jnp.float32)],       # lane-padded features
        ),
        compiler_params=pltpu.CompilerParams(
            dimension_semantics=("parallel",),   # v7x: split batch tiles across both TCs
        ),
        cost_estimate=pl.CostEstimate(
            flops=flops, transcendentals=transcendentals,
            bytes_accessed=bytes_accessed),
    )(feats, adj_bd, w_slab, b_slab)

    log_act = out[:B, :N]          # [B, N]
    value = out[:B, N:N + 1]       # [B, 1]
    return log_act, value


# ----------------------------------------------------------------------------
# Deterministic parameter init (PyTorch Linear-style uniform fan-in scaling).
# ----------------------------------------------------------------------------
def init_params(key, feature_num, gcn_hidden, inner_dim, graph_node_num):
    def linear(key, fan_in, fan_out):
        kw, kb = jax.random.split(key)
        bound = 1.0 / jnp.sqrt(fan_in)
        w = jax.random.uniform(kw, (fan_in, fan_out), jnp.float32, -bound, bound)
        b = jax.random.uniform(kb, (1, fan_out), jnp.float32, -bound, bound)
        return w, b

    keys = jax.random.split(key, 8)
    params = {}
    params["gc1_w"], params["gc1_b"] = linear(keys[0], feature_num, gcn_hidden)
    params["gc2_w"], params["gc2_b"] = linear(keys[1], gcn_hidden, gcn_hidden)
    params["act_fc1_w"], params["act_fc1_b"] = linear(keys[2], gcn_hidden, inner_dim)
    params["act_fc2_w"], params["act_fc2_b"] = linear(keys[3], inner_dim, inner_dim)
    params["act_fc3_w"], params["act_fc3_b"] = linear(keys[4], inner_dim, graph_node_num)
    params["val_fc1_w"], params["val_fc1_b"] = linear(keys[5], gcn_hidden, inner_dim)
    params["val_fc2_w"], params["val_fc2_b"] = linear(keys[6], inner_dim, inner_dim)
    params["val_fc3_w"], params["val_fc3_b"] = linear(keys[7], inner_dim, 1)
    return params


# ----------------------------------------------------------------------------
# Pure-JAX f32 reference (same math, unpacked params) for a sanity check.
# ----------------------------------------------------------------------------
def reference_forward(features, adj, p):
    h = jnp.einsum("bnm,bmf,fh->bnh", adj, features, p["gc1_w"]) + p["gc1_b"]
    h = jnp.maximum(h, 0.0)
    h = jnp.einsum("bnm,bmh,hk->bnk", adj, h, p["gc2_w"]) + p["gc2_b"]
    g = jnp.mean(h, axis=1)                                            # [B, H]
    xa = jnp.maximum(g @ p["act_fc1_w"] + p["act_fc1_b"], 0.0)
    xa = jnp.maximum(xa @ p["act_fc2_w"] + p["act_fc2_b"], 0.0)
    logits = xa @ p["act_fc3_w"] + p["act_fc3_b"]
    log_act = jax.nn.log_softmax(logits, axis=-1)
    xv = jnp.maximum(g @ p["val_fc1_w"] + p["val_fc1_b"], 0.0)
    xv = jnp.maximum(xv @ p["val_fc2_w"] + p["val_fc2_b"], 0.0)
    val = jnp.tanh(xv @ p["val_fc3_w"] + p["val_fc3_b"])
    return log_act, val


if __name__ == "__main__":
    # small config: feature_num=8, gcn_hidden_size=32, mcts_network_inner_dim=32,
    # preload_graph_node_num=16, batch=2
    B, N, F, H, D = 2, 16, 8, 32, 32

    key = jax.random.PRNGKey(0)
    k_feat, k_adj, k_par = jax.random.split(key, 3)

    features = jax.random.normal(k_feat, (B, N, F), dtype=jnp.float32)
    # symmetric row-normalized-ish adjacency with self loops
    a = jax.random.uniform(k_adj, (B, N, N), dtype=jnp.float32)
    a = (a + jnp.swapaxes(a, 1, 2)) * 0.5 + jnp.eye(N)[None]
    adj = a / jnp.sum(a, axis=-1, keepdims=True)

    params = init_params(k_par, F, H, D, N)
    w_slab, b_slab = pack_params(params, inner_dim=D, node_num=N)

    log_act, value = policy_value_forward(features, adj, w_slab, b_slab)
    jax.block_until_ready((log_act, value))

    ref_act, ref_val = reference_forward(features, adj, params)
    assert log_act.shape == (B, N) and value.shape == (B, 1)
    # bf16 MXU operands -> looser tolerance than the f32 kernel (per review)
    assert jnp.allclose(log_act, ref_act, atol=5e-2, rtol=5e-2)
    assert jnp.allclose(value, ref_val, atol=5e-2, rtol=5e-2)

    print("KERNEL_OK")
</pallas_src>

<mosaic_0001>
module attributes {stable_mosaic.version = 11 : i64} {
  func.func @_pvnet_kernel(%arg0: i32, %arg1: memref<8x16x8xf32, #tpu.memory_space<vmem>>, %arg2: memref<128x128xbf16, #tpu.memory_space<vmem>>, %arg3: memref<640x128xbf16, #tpu.memory_space<vmem>>, %arg4: memref<8x128xf32, #tpu.memory_space<vmem>>, %arg5: memref<8x128xf32, #tpu.memory_space<vmem>>, %arg6: memref<128x128xf32, #tpu.memory_space<vmem>>) attributes {dimension_semantics = [#tpu.dimension_semantics<parallel>], iteration_bounds = array<i64: 1>, scalar_prefetch = 0 : i64, scratch_operands = 1 : i64, tpu.core_type = #tpu.core_type<tc>, window_params = [{transform_indices = @transform_0, window_bounds = array<i64: 8, 16, 8>}, {transform_indices = @transform_1, window_bounds = array<i64: 128, 128>}, {pipeline_mode = #tpu.pipeline_mode<synchronous>, transform_indices = @transform_2, window_bounds = array<i64: 640, 128>}, {pipeline_mode = #tpu.pipeline_mode<synchronous>, transform_indices = @transform_3, window_bounds = array<i64: 8, 128>}, {transform_indices = @transform_4, window_bounds = array<i64: 8, 128>}]} {
    %c0_i32 = arith.constant 0 : i32
    %0 = arith.cmpi eq, %arg0, %c0_i32 : i32
    %1 = arith.extui %0 : i1 to i32
    %c0_i32_0 = arith.constant 0 : i32
    %2 = arith.cmpi ne, %1, %c0_i32_0 : i32
    scf.if %2 {
      %cst_42 = arith.constant 0.000000e+00 : f32
      %83 = vector.broadcast %cst_42 : f32 to vector<128x128xf32>
      %c0_43 = arith.constant 0 : index
      %c0_44 = arith.constant 0 : index
      %84 = vector.load %arg6[%c0_43, %c0_44] : memref<128x128xf32, #tpu.memory_space<vmem>>, vector<128x128xf32>
      tpu.vector_store %arg6[%c0_43, %c0_44], %83 {strides = array<i32>} : memref<128x128xf32, #tpu.memory_space<vmem>>, vector<128x128xf32>,
    } else {
    }
    %c0 = arith.constant 0 : index
    %c0_1 = arith.constant 0 : index
    %c0_2 = arith.constant 0 : index
    %3 = vector.load %arg1[%c0, %c0_1, %c0_2] : memref<8x16x8xf32, #tpu.memory_space<vmem>>, vector<8x16x8xf32>
    %4 = vector.shape_cast %3 : vector<8x16x8xf32> to vector<128x8xf32>
    %c0_3 = arith.constant 0 : index
    %c0_4 = arith.constant 0 : index
    %5 = vector.load %arg6[%c0_3, %c0_4] : memref<128x128xf32, #tpu.memory_space<vmem>>, vector<128x8xf32>
    tpu.vector_store %arg6[%c0_3, %c0_4], %4 {strides = array<i32>} : memref<128x128xf32, #tpu.memory_space<vmem>>, vector<128x8xf32>,
    %c0_5 = arith.constant 0 : index
    %c0_6 = arith.constant 0 : index
    %6 = vector.load %arg6[%c0_5, %c0_6] : memref<128x128xf32, #tpu.memory_space<vmem>>, vector<128x128xf32>
    %7 = arith.truncf %6 : vector<128x128xf32> to vector<128x128xbf16>
    %c0_7 = arith.constant 0 : index
    %c0_8 = arith.constant 0 : index
    %8 = vector.load %arg2[%c0_7, %c0_8] : memref<128x128xbf16, #tpu.memory_space<vmem>>, vector<128x128xbf16>
    %cst = arith.constant dense<0.000000e+00> : vector<128x128xf32>
    %9 = tpu.matmul %8, %7, %cst {dimension_numbers = #tpu.dot_dimension_numbers<[1], [0], [0], [1], [0, 0, 1, 1], [], []>} : vector<128x128xbf16>, vector<128x128xbf16>, vector<128x128xf32> -> vector<128x128xf32>
    %10 = arith.truncf %9 : vector<128x128xf32> to vector<128x128xbf16>
    %c0_9 = arith.constant 0 : index
    %c0_10 = arith.constant 0 : index
    %11 = vector.load %arg3[%c0_9, %c0_10] : memref<640x128xbf16, #tpu.memory_space<vmem>>, vector<128x128xbf16>
    %cst_11 = arith.constant dense<0.000000e+00> : vector<128x128xf32>
    %12 = tpu.matmul %10, %11, %cst_11 {dimension_numbers = #tpu.dot_dimension_numbers<[1], [0], [0], [1], [0, 0, 1, 1], [], []>} : vector<128x128xbf16>, vector<128x128xbf16>, vector<128x128xf32> -> vector<128x128xf32>
    %c0_12 = arith.constant 0 : index
    %c0_13 = arith.constant 0 : index
    %13 = vector.load %arg4[%c0_12, %c0_13] : memref<8x128xf32, #tpu.memory_space<vmem>>, vector<1x128xf32>
    %14 = vector.broadcast %13 : vector<1x128xf32> to vector<128x128xf32>
    %15 = arith.addf %12, %14 : vector<128x128xf32>
    %cst_14 = arith.constant 0.000000e+00 : f32
    %16 = vector.broadcast %cst_14 : f32 to vector<128x128xf32>
    %17 = arith.maximumf %15, %16 : vector<128x128xf32>
    %18 = arith.truncf %17 : vector<128x128xf32> to vector<128x128xbf16>
    %cst_15 = arith.constant dense<0.000000e+00> : vector<128x128xf32>
    %19 = tpu.matmul %8, %18, %cst_15 {dimension_numbers = #tpu.dot_dimension_numbers<[1], [0], [0], [1], [0, 0, 1, 1], [], []>} : vector<128x128xbf16>, vector<128x128xbf16>, vector<128x128xf32> -> vector<128x128xf32>
    %20 = arith.truncf %19 : vector<128x128xf32> to vector<128x128xbf16>
    %c128 = arith.constant 128 : index
    %c0_16 = arith.constant 0 : index
    %21 = vector.load %arg3[%c128, %c0_16] : memref<640x128xbf16, #tpu.memory_space<vmem>>, vector<128x128xbf16>
    %cst_17 = arith.constant dense<0.000000e+00> : vector<128x128xf32>
    %22 = tpu.matmul %20, %21, %cst_17 {dimension_numbers = #tpu.dot_dimension_numbers<[1], [0], [0], [1], [0, 0, 1, 1], [], []>} : vector<128x128xbf16>, vector<128x128xbf16>, vector<128x128xf32> -> vector<128x128xf32>
    %c1 = arith.constant 1 : index
    %c0_18 = arith.constant 0 : index
    %23 = vector.load %arg4[%c1, %c0_18] : memref<8x128xf32, #tpu.memory_space<vmem>>, vector<1x128xf32>
    %24 = vector.broadcast %23 : vector<1x128xf32> to vector<128x128xf32>
    %25 = arith.addf %22, %24 : vector<128x128xf32>
    %26 = vector.shape_cast %25 : vector<128x128xf32> to vector<8x16x128xf32>
    %cst_19 = arith.constant dense<0.000000e+00> : vector<8x128xf32>
    %27 = vector.multi_reduction <add>, %26, %cst_19 [1] : vector<8x16x128xf32> to vector<8x128xf32>
    %cst_20 = arith.constant 1.600000e+01 : f32
    %28 = vector.broadcast %cst_20 : f32 to vector<8x128xf32>
    %29 = arith.divf %27, %28 : vector<8x128xf32>
    %30 = arith.truncf %29 : vector<8x128xf32> to vector<8x128xbf16>
    %c256 = arith.constant 256 : index
    %c0_21 = arith.constant 0 : index
    %31 = vector.load %arg3[%c256, %c0_21] : memref<640x128xbf16, #tpu.memory_space<vmem>>, vector<128x128xbf16>
    %cst_22 = arith.constant dense<0.000000e+00> : vector<8x128xf32>
    %32 = tpu.matmul %30, %31, %cst_22 {dimension_numbers = #tpu.dot_dimension_numbers<[1], [0], [0], [1], [0, 0, 1, 1], [], []>} : vector<8x128xbf16>, vector<128x128xbf16>, vector<8x128xf32> -> vector<8x128xf32>
    %c2 = arith.constant 2 : index
    %c0_23 = arith.constant 0 : index
    %33 = vector.load %arg4[%c2, %c0_23] : memref<8x128xf32, #tpu.memory_space<vmem>>, vector<1x128xf32>
    %34 = vector.broadcast %33 : vector<1x128xf32> to vector<8x128xf32>
    %35 = arith.addf %32, %34 : vector<8x128xf32>
    %cst_24 = arith.constant 0.000000e+00 : f32
    %36 = vector.broadcast %cst_24 : f32 to vector<8x128xf32>
    %37 = arith.maximumf %35, %36 : vector<8x128xf32>
    %38 = arith.truncf %37 : vector<8x128xf32> to vector<8x128xbf16>
    %c384 = arith.constant 384 : index
    %c0_25 = arith.constant 0 : index
    %39 = vector.load %arg3[%c384, %c0_25] : memref<640x128xbf16, #tpu.memory_space<vmem>>, vector<128x128xbf16>
    %cst_26 = arith.constant dense<0.000000e+00> : vector<8x128xf32>
    %40 = tpu.matmul %38, %39, %cst_26 {dimension_numbers = #tpu.dot_dimension_numbers<[1], [0], [0], [1], [0, 0, 1, 1], [], []>} : vector<8x128xbf16>, vector<128x128xbf16>, vector<8x128xf32> -> vector<8x128xf32>
    %c3 = arith.constant 3 : index
    %c0_27 = arith.constant 0 : index
    %41 = vector.load %arg4[%c3, %c0_27] : memref<8x128xf32, #tpu.memory_space<vmem>>, vector<1x128xf32>
    %42 = vector.broadcast %41 : vector<1x128xf32> to vector<8x128xf32>
    %43 = arith.addf %40, %42 : vector<8x128xf32>
    %cst_28 = arith.constant 0.000000e+00 : f32
    %44 = vector.broadcast %cst_28 : f32 to vector<8x128xf32>
    %45 = arith.maximumf %43, %44 : vector<8x128xf32>
    %46 = arith.truncf %45 : vector<8x128xf32> to vector<8x128xbf16>
    %c512 = arith.constant 512 : index
    %c0_29 = arith.constant 0 : index
    %47 = vector.load %arg3[%c512, %c0_29] : memref<640x128xbf16, #tpu.memory_space<vmem>>, vector<128x128xbf16>
    %cst_30 = arith.constant dense<0.000000e+00> : vector<8x128xf32>
    %48 = tpu.matmul %46, %47, %cst_30 {dimension_numbers = #tpu.dot_dimension_numbers<[1], [0], [0], [1], [0, 0, 1, 1], [], []>} : vector<8x128xbf16>, vector<128x128xbf16>, vector<8x128xf32> -> vector<8x128xf32>
    %c4 = arith.constant 4 : index
    %c0_31 = arith.constant 0 : index
    %49 = vector.load %arg4[%c4, %c0_31] : memref<8x128xf32, #tpu.memory_space<vmem>>, vector<1x128xf32>
    %50 = vector.broadcast %49 : vector<1x128xf32> to vector<8x128xf32>
    %51 = arith.addf %48, %50 : vector<8x128xf32>
    %52 = tpu.iota {dimensions = array<i32: 1>} : vector<8x128xi32>
    %c16_i32 = arith.constant 16 : i32
    %53 = vector.broadcast %c16_i32 : i32 to vector<8x128xi32>
    %54 = arith.cmpi slt, %52, %53 : vector<8x128xi32>
    %cst_32 = arith.constant 0xFF800000 : f32
    %55 = vector.broadcast %cst_32 : f32 to vector<8x128xf32>
    %56 = arith.select %54, %51, %55 : vector<8x128xi1>, vector<8x128xf32>
    %cst_33 = arith.constant dense<0xFF800000> : vector<8xf32>
    %57 = vector.multi_reduction <maximumf>, %56, %cst_33 [1] : vector<8x128xf32> to vector<8xf32>
    %58 = vector.shape_cast %57 : vector<8xf32> to vector<8x1xf32>
    %59 = vector.broadcast %58 : vector<8x1xf32> to vector<8x128xf32>
    %60 = arith.subf %56, %59 : vector<8x128xf32>
    %61 = math.exp %60 : vector<8x128xf32>
    %cst_34 = arith.constant dense<0.000000e+00> : vector<8xf32>
    %62 = vector.multi_reduction <add>, %61, %cst_34 [1] : vector<8x128xf32> to vector<8xf32>
    %63 = vector.shape_cast %62 : vector<8xf32> to vector<8x1xf32>
    %64 = math.log %63 : vector<8x1xf32>
    %65 = arith.addf %64, %58 : vector<8x1xf32>
    %66 = vector.broadcast %65 : vector<8x1xf32> to vector<8x128xf32>
    %67 = arith.subf %51, %66 : vector<8x128xf32>
    %c16_i32_35 = arith.constant 16 : i32
    %68 = vector.broadcast %c16_i32_35 : i32 to vector<8x128xi32>
    %69 = arith.cmpi eq, %52, %68 : vector<8x128xi32>
    %cst_36 = arith.constant 0.000000e+00 : f32
    %70 = vector.broadcast %cst_36 : f32 to vector<8x128xf32>
    %71 = arith.select %69, %51, %70 : vector<8x128xi1>, vector<8x128xf32>
    %cst_37 = arith.constant dense<0.000000e+00> : vector<8xf32>
    %72 = vector.multi_reduction <add>, %71, %cst_37 [1] : vector<8x128xf32> to vector<8xf32>
    %73 = vector.shape_cast %72 : vector<8xf32> to vector<8x1xf32>
    %74 = math.tanh %73 : vector<8x1xf32>
    %c16_i32_38 = arith.constant 16 : i32
    %75 = vector.broadcast %c16_i32_38 : i32 to vector<8x128xi32>
    %76 = arith.cmpi eq, %52, %75 : vector<8x128xi32>
    %cst_39 = arith.constant 0.000000e+00 : f32
    %77 = vector.shape_cast %74 : vector<8x1xf32> to vector<8x1xf32>
    %78 = vector.broadcast %77 : vector<8x1xf32> to vector<8x128xf32>
    %79 = vector.broadcast %cst_39 : f32 to vector<8x128xf32>
    %80 = arith.select %76, %78, %79 : vector<8x128xi1>, vector<8x128xf32>
    %81 = arith.select %54, %67, %80 : vector<8x128xi1>, vector<8x128xf32>
    %c0_40 = arith.constant 0 : index
    %c0_41 = arith.constant 0 : index
    %82 = vector.load %arg5[%c0_40, %c0_41] : memref<8x128xf32, #tpu.memory_space<vmem>>, vector<8x128xf32>
    tpu.vector_store %arg5[%c0_40, %c0_41], %81 {strides = array<i32>} : memref<8x128xf32, #tpu.memory_space<vmem>>, vector<8x128xf32>,
    return
  }
  func.func @transform_0(%arg0: i32) -> (i32, i32, i32) {
    %c0_i32 = arith.constant 0 : i32
    %c0_i32_0 = arith.constant 0 : i32
    %c0_i32_1 = arith.constant 0 : i32
    return %arg0, %c0_i32, %c0_i32_0 : i32, i32, i32
  }
  func.func @transform_1(%arg0: i32) -> (i32, i32) {
    %c0_i32 = arith.constant 0 : i32
    %c0_i32_0 = arith.constant 0 : i32
    return %arg0, %c0_i32 : i32, i32
  }
  func.func @transform_2(%arg0: i32) -> (i32, i32) {
    %c0_i32 = arith.constant 0 : i32
    %c0_i32_0 = arith.constant 0 : i32
    %c0_i32_1 = arith.constant 0 : i32
    return %c0_i32, %c0_i32_0 : i32, i32
  }
  func.func @transform_3(%arg0: i32) -> (i32, i32) {
    %c0_i32 = arith.constant 0 : i32
    %c0_i32_0 = arith.constant 0 : i32
    %c0_i32_1 = arith.constant 0 : i32
    return %c0_i32, %c0_i32_0 : i32, i32
  }
  func.func @transform_4(%arg0: i32) -> (i32, i32) {
    %c0_i32 = arith.constant 0 : i32
    %c0_i32_0 = arith.constant 0 : i32
    return %arg0, %c0_i32 : i32, i32
  }
}

</mosaic_0001>

<llo_original>
// kernel: tpu_custom_call.1
$region0: #{tpu_custom_call.1}
  #allocation0 [shape = 'u32[]', space=smem, size = 0x4, offset = 0x4, fixed_abs, tag = 'smem constant byte address 0x4 - core index']
  #allocation1 [shape = 'u32[144,128]{1,0:T(1,128)}', space=vmem, size = 0x12000, scoped, tag = 'internal scratch']
  #allocation2 [shape = 'f32[128,128]{1,0:T(8,128)}', space=vmem, size = 0x10000, scoped, tag = 'scratch operand']
  %s0 = inlined_call_operand.vmem [shape: f32[8,16,8], index: 0, kind: input, shape index: {}]
  %s1 = inlined_call_operand.vmem [shape: bf16[128,128], index: 1, kind: input, shape index: {}]
  %s2 = inlined_call_operand.hbm [shape: bf16[640,128], index: 2, kind: input, shape index: {}]
  %s3 = inlined_call_operand.vmem [shape: f32[8,128], index: 3, kind: input, shape index: {}]
  %s4 = inlined_call_operand.hbm [shape: f32[8,128], index: 4, kind: output, shape index: {}]
  %s5 = sld [smem:[#allocation0]]
  $region34: #{tpu_custom_call.1} parent=0
    _
  %s7 = ssub.s32 1, %s5
  %s8 = scalar_select 0, %s7, %s5
  $region1: #{tpu_custom_call.1} parent=0
    #allocation3 [shape = 'u8[163840]{0}', space=vmem, size = 0x28000, scoped, tag = 'input window, operand 2, single buffered']
    #allocation4 [shape = 's32[1]{0}', space=sflag, size = 0x4, scoped, tag = 'scoped memory for tpu_custom_call.1']
    #allocation5 [shape = 's32[1]{0}', space=sflag, size = 0x4, scoped, tag = 'scoped memory for tpu_custom_call.1']
    #allocation6 [shape = 'u8[4096]{0}', space=vmem, size = 0x1000, scoped, tag = 'output window, operand 0, single buffered']
    %9 = vsyncpa [#allocation4], 0
    %10 = vsyncpa [#allocation5], 0
    // Predicated region
    $region2: #{tpu_custom_call.1} parent=1 // pred_check
      _
    $region3: #{tpu_custom_call.1} parent=1 // pred_check_branch
      %12 = sbr.rel (0) target = $region5
    $region4: #{tpu_custom_call.1} parent=1 // pred_region
      _
    $region5: #{tpu_custom_call.1} parent=1 // pred_fallthru
      _
    // Predicated region
    $region6: #{tpu_custom_call.1} parent=1 // pred_check
      _
    $region7: #{tpu_custom_call.1} parent=1 // pred_check_branch
      %14 = sbr.rel (0) target = $region9
    $region8: #{tpu_custom_call.1} parent=1 // pred_region
      _
    $region9: #{tpu_custom_call.1} parent=1 // pred_fallthru
      _
    // Predicated region
    $region10: #{tpu_custom_call.1} parent=1 // pred_check
      _
    $region11: #{tpu_custom_call.1} parent=1 // pred_check_branch
      %16 = sbr.rel (0) target = $region13
    $region12: #{tpu_custom_call.1} parent=1 // pred_region
      %s18 = ssub.s32 5120, 5120
      %19 = vsyncadd [#allocation4], %s18
      %s20 = sshll.u32 [#allocation3], 4
      %s21 = int_to_ptr.vmem [resolvable:$true] %s20
      %26 = dma.hbm_to_vmem [thread:$0]  %s2, 5120, %s21, [#allocation4], 64, 64, 4
    $region13: #{tpu_custom_call.1} parent=1 // pred_fallthru
      _
    // Predicated region
    $region14: #{tpu_custom_call.1} parent=1 // pred_check
      _
    $region15: #{tpu_custom_call.1} parent=1 // pred_check_branch
      %28 = sbr.rel (0) target = $region17
    $region16: #{tpu_custom_call.1} parent=1 // pred_region
      _
    $region17: #{tpu_custom_call.1} parent=1 // pred_fallthru
      _
    // Predicated region
    $region18: #{tpu_custom_call.1} parent=1 // pred_check
      _
    $region19: #{tpu_custom_call.1} parent=1 // pred_check_branch
      %30 = sbr.rel (0) target = $region21
    $region20: #{tpu_custom_call.1} parent=1 // pred_region
      %31 = dma.done [#allocation4], 5120
    $region21: #{tpu_custom_call.1} parent=1 // pred_fallthru
      _
    %p33 = scmp.eq.s32.totalorder 0, 0
    // Predicated region
    $region22: #{tpu_custom_call.1} parent=1 // pred_check
      %p34 = pneg %p33
    $region23: #{tpu_custom_call.1} parent=1 // pred_check_branch
      %36 = sbr.rel (%p34) target = $region25
    $region24: #{tpu_custom_call.1} parent=1 // pred_region
      %37 = vst [vmem:[#allocation2] sm:$0xff] 0.0
      %38 = vst [vmem:[#allocation2 + $0x8] sm:$0xff] 0.0
      %39 = vst [vmem:[#allocation2 + $0x10] sm:$0xff] 0.0
      %40 = vst [vmem:[#allocation2 + $0x18] sm:$0xff] 0.0
      %41 = vst [vmem:[#allocation2 + $0x20] sm:$0xff] 0.0
      %42 = vst [vmem:[#allocation2 + $0x28] sm:$0xff] 0.0
      %43 = vst [vmem:[#allocation2 + $0x30] sm:$0xff] 0.0
      %44 = vst [vmem:[#allocation2 + $0x38] sm:$0xff] 0.0
      %45 = vst [vmem:[#allocation2 + $0x40] sm:$0xff] 0.0
      %46 = vst [vmem:[#allocation2 + $0x48] sm:$0xff] 0.0
      %47 = vst [vmem:[#allocation2 + $0x50] sm:$0xff] 0.0
      %48 = vst [vmem:[#allocation2 + $0x58] sm:$0xff] 0.0
      %49 = vst [vmem:[#allocation2 + $0x60] sm:$0xff] 0.0
      %50 = vst [vmem:[#allocation2 + $0x68] sm:$0xff] 0.0
      %51 = vst [vmem:[#allocation2 + $0x70] sm:$0xff] 0.0
      %52 = vst [vmem:[#allocation2 + $0x78] sm:$0xff] 0.0
    $region25: #{tpu_custom_call.1} parent=1 // pred_fallthru
      _
    %v53 = vld [vmem:[%s0] sm:$0xff]
    %v54 = vld [vmem:[%s0 + $0x8] sm:$0xff]
    %v55 = vld [vmem:[%s0 + $0x10] sm:$0xff]
    %v56 = vld [vmem:[%s0 + $0x18] sm:$0xff]
    %v57 = vld [vmem:[%s0 + $0x20] sm:$0xff]
    %v58 = vld [vmem:[%s0 + $0x28] sm:$0xff]
    %v59 = vld [vmem:[%s0 + $0x30] sm:$0xff]
    %v60 = vld [vmem:[%s0 + $0x38] sm:$0xff]
    %v61 = vld [vmem:[%s0 + $0x40] sm:$0xff]
    %v62 = vld [vmem:[%s0 + $0x48] sm:$0xff]
    %v63 = vld [vmem:[%s0 + $0x50] sm:$0xff]
    %v64 = vld [vmem:[%s0 + $0x58] sm:$0xff]
    %v65 = vld [vmem:[%s0 + $0x60] sm:$0xff]
    %v66 = vld [vmem:[%s0 + $0x68] sm:$0xff]
    %v67 = vld [vmem:[%s0 + $0x70] sm:$0xff]
    %v68 = vld [vmem:[%s0 + $0x78] sm:$0xff]
    %vm69 = vcmask 64512
    %70 = vst.msk [vmem:[#allocation2] sm:$0xff] %vm69, %v53
    %71 = vst.msk [vmem:[#allocation2 + $0x8] sm:$0xff] %vm69, %v54
    %72 = vst.msk [vmem:[#allocation2 + $0x10] sm:$0xff] %vm69, %v55
    %73 = vst.msk [vmem:[#allocation2 + $0x18] sm:$0xff] %vm69, %v56
    %74 = vst.msk [vmem:[#allocation2 + $0x20] sm:$0xff] %vm69, %v57
    %75 = vst.msk [vmem:[#allocation2 + $0x28] sm:$0xff] %vm69, %v58
    %76 = vst.msk [vmem:[#allocation2 + $0x30] sm:$0xff] %vm69, %v59
    %77 = vst.msk [vmem:[#allocation2 + $0x38] sm:$0xff] %vm69, %v60
    %78 = vst.msk [vmem:[#allocation2 + $0x40] sm:$0xff] %vm69, %v61
    %79 = vst.msk [vmem:[#allocation2 + $0x48] sm:$0xff] %vm69, %v62
    %80 = vst.msk [vmem:[#allocation2 + $0x50] sm:$0xff] %vm69, %v63
    %81 = vst.msk [vmem:[#allocation2 + $0x58] sm:$0xff] %vm69, %v64
    %82 = vst.msk [vmem:[#allocation2 + $0x60] sm:$0xff] %vm69, %v65
    %83 = vst.msk [vmem:[#allocation2 + $0x68] sm:$0xff] %vm69, %v66
    %84 = vst.msk [vmem:[#allocation2 + $0x70] sm:$0xff] %vm69, %v67
    %85 = vst.msk [vmem:[#allocation2 + $0x78] sm:$0xff] %vm69, %v68
    %v86 = vld [vmem:[#allocation2] sm:$0xff]
    %v87 = vld [vmem:[#allocation2 + $0x8] sm:$0xff]
    %v88 = vld [vmem:[#allocation2 + $0x10] sm:$0xff]
    %v89 = vld [vmem:[#allocation2 + $0x18] sm:$0xff]
    %v90 = vld [vmem:[#allocation2 + $0x20] sm:$0xff]
    %v91 = vld [vmem:[#allocation2 + $0x28] sm:$0xff]
    %v92 = vld [vmem:[#allocation2 + $0x30] sm:$0xff]
    %v93 = vld [vmem:[#allocation2 + $0x38] sm:$0xff]
    %v94 = vld [vmem:[#allocation2 + $0x40] sm:$0xff]
    %v95 = vld [vmem:[#allocation2 + $0x48] sm:$0xff]
    %v96 = vld [vmem:[#allocation2 + $0x50] sm:$0xff]
    %v97 = vld [vmem:[#allocation2 + $0x58] sm:$0xff]
    %v98 = vld [vmem:[#allocation2 + $0x60] sm:$0xff]
    %v99 = vld [vmem:[#allocation2 + $0x68] sm:$0xff]
    %v100 = vld [vmem:[#allocation2 + $0x70] sm:$0xff]
    %v101 = vld [vmem:[#allocation2 + $0x78] sm:$0xff]
    %v102 = vpack.c.bf16 %v87, %v86
    %v103 = vpack.c.bf16 %v89, %v88
    %v104 = vpack.c.bf16 %v91, %v90
    %v105 = vpack.c.bf16 %v93, %v92
    %v106 = vpack.c.bf16 %v95, %v94
    %v107 = vpack.c.bf16 %v97, %v96
    %v108 = vpack.c.bf16 %v99, %v98
    %v109 = vpack.c.bf16 %v101, %v100
    %v110 = vld [vmem:[%s1] sm:$0xf]
    %v111 = vld [vmem:[%s1 + $0x4] sm:$0xf]
    %v112 = vld [vmem:[%s1 + $0x8] sm:$0xf]
    %v113 = vld [vmem:[%s1 + $0xc] sm:$0xf]
    %v114 = vld [vmem:[%s1 + $0x10] sm:$0xf]
    %v115 = vld [vmem:[%s1 + $0x14] sm:$0xf]
    %v116 = vld [vmem:[%s1 + $0x18] sm:$0xf]
    %v117 = vld [vmem:[%s1 + $0x1c] sm:$0xf]
    %v118 = vld [vmem:[%s1 + $0x20] sm:$0xf]
    %v119 = vld [vmem:[%s1 + $0x24] sm:$0xf]
    %v120 = vld [vmem:[%s1 + $0x28] sm:$0xf]
    %v121 = vld [vmem:[%s1 + $0x2c] sm:$0xf]
    %v122 = vld [vmem:[%s1 + $0x30] sm:$0xf]
    %v123 = vld [vmem:[%s1 + $0x34] sm:$0xf]
    %v124 = vld [vmem:[%s1 + $0x38] sm:$0xf]
    %v125 = vld [vmem:[%s1 + $0x3c] sm:$0xf]
    %v142 = vunpack.c.l.b16 %v110
    %v143 = vunpack.c.l.b16 %v111
    %v144 = vunpack.c.l.b16 %v112
    %v145 = vunpack.c.l.b16 %v113
    %v146 = vunpack.c.l.b16 %v114
    %v147 = vunpack.c.l.b16 %v115
    %v148 = vunpack.c.l.b16 %v116
    %v149 = vunpack.c.l.b16 %v117
    %v150 = vunpack.c.l.b16 %v118
    %v151 = vunpack.c.l.b16 %v119
    %v152 = vunpack.c.l.b16 %v120
    %v153 = vunpack.c.l.b16 %v121
    %v154 = vunpack.c.l.b16 %v122
    %v155 = vunpack.c.l.b16 %v123
    %v156 = vunpack.c.l.b16 %v124
    %v157 = vunpack.c.l.b16 %v125
    %v158 = vpack.c.b16 %v143, %v142
    %v159 = vpack.c.b16 %v145, %v144
    %v160 = vpack.c.b16 %v147, %v146
    %v161 = vpack.c.b16 %v149, %v148
    %v162 = vpack.c.b16 %v151, %v150
    %v163 = vpack.c.b16 %v153, %v152
    %v164 = vpack.c.b16 %v155, %v154
    %v165 = vpack.c.b16 %v157, %v156
    %174 = vmatprep.subr.bf16.mxu0 0
    %175 = vmatpush1.bf16.msra.mxu0 %v102
    %176 = vmatprep.subr.bf16.mxu0 0
    %177 = vmatpush1.bf16.msra.mxu0 %v103
    %178 = vmatprep.subr.bf16.mxu0 0
    %179 = vmatpush1.bf16.msra.mxu0 %v104
    %180 = vmatprep.subr.bf16.mxu0 0
    %181 = vmatpush1.bf16.msra.mxu0 %v105
    %182 = vmatprep.subr.bf16.mxu0 0
    %183 = vmatpush1.bf16.msra.mxu0 %v106
    %184 = vmatprep.subr.bf16.mxu0 0
    %185 = vmatpush1.bf16.msra.mxu0 %v107
    %186 = vmatprep.subr.bf16.mxu0 0
    %187 = vmatpush1.bf16.msra.mxu0 %v108
    %188 = vmatprep.subr.bf16.mxu0 0
    %189 = vmatpush1.bf16.msra.mxu0 %v109
    %190 = vmatprep.subr.bf16.mxu0 0
    %191 = vmatpush1.bf16.msra.mxu0 0
    %192 = vmatprep.subr.bf16.mxu0 0
    %193 = vmatpush1.bf16.msra.mxu0 0
    %194 = vmatprep.subr.bf16.mxu0 0
    %195 = vmatpush1.bf16.msra.mxu0 0
    %196 = vmatprep.subr.bf16.mxu0 0
    %197 = vmatpush1.bf16.msra.mxu0 0
    %198 = vmatprep.subr.bf16.mxu0 0
    %199 = vmatpush1.bf16.msra.mxu0 0
    %200 = vmatprep.subr.bf16.mxu0 0
    %201 = vmatpush1.bf16.msra.mxu0 0
    %202 = vmatprep.subr.bf16.mxu0 0
    %203 = vmatpush1.bf16.msra.mxu0 0
    %204 = vmatprep.subr.bf16.mxu0 0
    %205 = vmatpush1.bf16.msra.mxu0 0
    %206 = vmatprep.mubr.bf16.mxu0 0
    %207 = vmatmul.mubr.bf16.gmra.mrb[0].mxu0 %v158
    %v208 = vpop.f32.mrb[0].mxu0
    %v209 = vadd.f32 0.0, %v208
    %v210 = vpop.f32.mrb[0].mxu0
    %v211 = vpop.f32.mrb[0].mxu0
    %v212 = vadd.f32 0.0, %v211
    %v213 = vpop.f32.mrb[0].mxu0
    %214 = vmatprep.mubr.bf16.mxu0 0
    %215 = vmatmul.mubr.bf16.gmra.mrb[0].mxu0 %v159
    %v216 = vpop.f32.mrb[0].mxu0
    %v217 = vadd.f32 0.0, %v216
    %v218 = vpop.f32.mrb[0].mxu0
    %v219 = vpop.f32.mrb[0].mxu0
    %v220 = vadd.f32 0.0, %v219
    %v221 = vpop.f32.mrb[0].mxu0
    %222 = vmatprep.mubr.bf16.mxu0 0
    %223 = vmatmul.mubr.bf16.gmra.mrb[0].mxu0 %v160
    %v224 = vpop.f32.mrb[0].mxu0
    %v225 = vadd.f32 0.0, %v224
    %v226 = vpop.f32.mrb[0].mxu0
    %v227 = vpop.f32.mrb[0].mxu0
    %v228 = vadd.f32 0.0, %v227
    %v229 = vpop.f32.mrb[0].mxu0
    %230 = vmatprep.mubr.bf16.mxu0 0
    %231 = vmatmul.mubr.bf16.gmra.mrb[0].mxu0 %v161
    %v232 = vpop.f32.mrb[0].mxu0
    %v233 = vadd.f32 0.0, %v232
    %v234 = vpop.f32.mrb[0].mxu0
    %v235 = vpop.f32.mrb[0].mxu0
    %v236 = vadd.f32 0.0, %v235
    %v237 = vpop.f32.mrb[0].mxu0
    %238 = vmatprep.mubr.bf16.mxu0 0
    %239 = vmatmul.mubr.bf16.gmra.mrb[0].mxu0 %v162
    %v240 = vpop.f32.mrb[0].mxu0
    %v241 = vadd.f32 0.0, %v240
    %v242 = vpop.f32.mrb[0].mxu0
    %v243 = vpop.f32.mrb[0].mxu0
    %v244 = vadd.f32 0.0, %v243
    %v245 = vpop.f32.mrb[0].mxu0
    %246 = vmatprep.mubr.bf16.mxu0 0
    %247 = vmatmul.mubr.bf16.gmra.mrb[0].mxu0 %v163
    %v248 = vpop.f32.mrb[0].mxu0
    %v249 = vadd.f32 0.0, %v248
    %v250 = vpop.f32.mrb[0].mxu0
    %v251 = vpop.f32.mrb[0].mxu0
    %v252 = vadd.f32 0.0, %v251
    %v253 = vpop.f32.mrb[0].mxu0
    %254 = vmatprep.mubr.bf16.mxu0 0
    %255 = vmatmul.mubr.bf16.gmra.mrb[0].mxu0 %v164
    %v256 = vpop.f32.mrb[0].mxu0
    %v257 = vadd.f32 0.0, %v256
    %v258 = vpop.f32.mrb[0].mxu0
    %v259 = vpop.f32.mrb[0].mxu0
    %v260 = vadd.f32 0.0, %v259
    %v261 = vpop.f32.mrb[0].mxu0
    %262 = vmatprep.mubr.bf16.mxu0 0
    %263 = vmatmul.mubr.bf16.gmra.mrb[0].mxu0 %v165
    %v264 = vpop.f32.mrb[0].mxu0
    %v265 = vadd.f32 0.0, %v264
    %v266 = vpop.f32.mrb[0].mxu0
    %v267 = vpop.f32.mrb[0].mxu0
    %v268 = vadd.f32 0.0, %v267
    %v269 = vpop.f32.mrb[0].mxu0
    %270 = vdwg.mxu0
    %v271 = vpack.c.bf16 %v212, %v209
    %v272 = vpack.c.bf16 %v220, %v217
    %v273 = vpack.c.bf16 %v228, %v225
    %v274 = vpack.c.bf16 %v236, %v233
    %v275 = vpack.c.bf16 %v244, %v241
    %v276 = vpack.c.bf16 %v252, %v249
    %v277 = vpack.c.bf16 %v260, %v257
    %v278 = vpack.c.bf16 %v268, %v265
    %v279 = vld [vmem:[#allocation3] sm:$0xf]
    %v280 = vld [vmem:[#allocation3 + $0x4] sm:$0xf]
    %v281 = vld [vmem:[#allocation3 + $0x8] sm:$0xf]
    %v282 = vld [vmem:[#allocation3 + $0xc] sm:$0xf]
    %v283 = vld [vmem:[#allocation3 + $0x10] sm:$0xf]
    %v284 = vld [vmem:[#allocation3 + $0x14] sm:$0xf]
    %v285 = vld [vmem:[#allocation3 + $0x18] sm:$0xf]
    %v286 = vld [vmem:[#allocation3 + $0x1c] sm:$0xf]
    %v287 = vld [vmem:[#allocation3 + $0x20] sm:$0xf]
    %v288 = vld [vmem:[#allocation3 + $0x24] sm:$0xf]
    %v289 = vld [vmem:[#allocation3 + $0x28] sm:$0xf]
    %v290 = vld [vmem:[#allocation3 + $0x2c] sm:$0xf]
    %v291 = vld [vmem:[#allocation3 + $0x30] sm:$0xf]
    %v292 = vld [vmem:[#allocation3 + $0x34] sm:$0xf]
    %v293 = vld [vmem:[#allocation3 + $0x38] sm:$0xf]
    %v294 = vld [vmem:[#allocation3 + $0x3c] sm:$0xf]
    %v295 = vld [vmem:[%s3] sm:$0x1]
    %v296 = vlaneseq
    %v297 = vshrl.u32 %v296, 7
    %v298 = vsub.s32 0, %v297
    %v299 = vrot.slane %v295, %v298
    %v316 = vunpack.c.l.b16 %v279
    %v317 = vunpack.c.l.b16 %v280
    %v318 = vunpack.c.l.b16 %v281
    %v319 = vunpack.c.l.b16 %v282
    %v320 = vunpack.c.l.b16 %v283
    %v321 = vunpack.c.l.b16 %v284
    %v322 = vunpack.c.l.b16 %v285
    %v323 = vunpack.c.l.b16 %v286
    %v324 = vunpack.c.l.b16 %v287
    %v325 = vunpack.c.l.b16 %v288
    %v326 = vunpack.c.l.b16 %v289
    %v327 = vunpack.c.l.b16 %v290
    %v328 = vunpack.c.l.b16 %v291
    %v329 = vunpack.c.l.b16 %v292
    %v330 = vunpack.c.l.b16 %v293
    %v331 = vunpack.c.l.b16 %v294
    %v332 = vpack.c.b16 %v317, %v316
    %v333 = vpack.c.b16 %v319, %v318
    %v334 = vpack.c.b16 %v321, %v320
    %v335 = vpack.c.b16 %v323, %v322
    %v336 = vpack.c.b16 %v325, %v324
    %v337 = vpack.c.b16 %v327, %v326
    %v338 = vpack.c.b16 %v329, %v328
    %v339 = vpack.c.b16 %v331, %v330
    %348 = vmatprep.subr.bf16.mxu0 0
    %349 = vmatpush1.bf16.msra.mxu0 %v332
    %350 = vmatprep.subr.bf16.mxu0 0
    %351 = vmatpush1.bf16.msra.mxu0 %v333
    %352 = vmatprep.subr.bf16.mxu0 0
    %353 = vmatpush1.bf16.msra.mxu0 %v334
    %354 = vmatprep.subr.bf16.mxu0 0
    %355 = vmatpush1.bf16.msra.mxu0 %v335
    %356 = vmatprep.subr.bf16.mxu0 0
    %357 = vmatpush1.bf16.msra.mxu0 %v336
    %358 = vmatprep.subr.bf16.mxu0 0
    %359 = vmatpush1.bf16.msra.mxu0 %v337
    %360 = vmatprep.subr.bf16.mxu0 0
    %361 = vmatpush1.bf16.msra.mxu0 %v338
    %362 = vmatprep.subr.bf16.mxu0 0
    %363 = vmatpush1.bf16.msra.mxu0 %v339
    %364 = vmatprep.subr.bf16.mxu0 0
    %365 = vmatpush1.bf16.msra.mxu0 0
    %366 = vmatprep.subr.bf16.mxu0 0
    %367 = vmatpush1.bf16.msra.mxu0 0
    %368 = vmatprep.subr.bf16.mxu0 0
    %369 = vmatpush1.bf16.msra.mxu0 0
    %370 = vmatprep.subr.bf16.mxu0 0
    %371 = vmatpush1.bf16.msra.mxu0 0
    %372 = vmatprep.subr.bf16.mxu0 0
    %373 = vmatpush1.bf16.msra.mxu0 0
    %374 = vmatprep.subr.bf16.mxu0 0
    %375 = vmatpush1.bf16.msra.mxu0 0
    %376 = vmatprep.subr.bf16.mxu0 0
    %377 = vmatpush1.bf16.msra.mxu0 0
    %378 = vmatprep.subr.bf16.mxu0 0
    %379 = vmatpush1.bf16.msra.mxu0 0
    %380 = vmatprep.mubr.bf16.mxu0 0
    %381 = vmatmul.mubr.bf16.gmra.mrb[0].mxu0 %v271
    %v382 = vpop.f32.mrb[0].mxu0
    %v383 = vadd.f32 %v299, %v382
    %v384 = vpop.f32.mrb[0].mxu0
    %v385 = vpop.f32.mrb[0].mxu0
    %v386 = vadd.f32 %v299, %v385
    %v387 = vpop.f32.mrb[0].mxu0
    %388 = vmatprep.mubr.bf16.mxu0 0
    %389 = vmatmul.mubr.bf16.gmra.mrb[0].mxu0 %v272
    %v390 = vpop.f32.mrb[0].mxu0
    %v391 = vadd.f32 %v299, %v390
    %v392 = vpop.f32.mrb[0].mxu0
    %v393 = vpop.f32.mrb[0].mxu0
    %v394 = vadd.f32 %v299, %v393
    %v395 = vpop.f32.mrb[0].mxu0
    %396 = vmatprep.mubr.bf16.mxu0 0
    %397 = vmatmul.mubr.bf16.gmra.mrb[0].mxu0 %v273
    %v398 = vpop.f32.mrb[0].mxu0
    %v399 = vadd.f32 %v299, %v398
    %v400 = vpop.f32.mrb[0].mxu0
    %v401 = vpop.f32.mrb[0].mxu0
    %v402 = vadd.f32 %v299, %v401
    %v403 = vpop.f32.mrb[0].mxu0
    %404 = vmatprep.mubr.bf16.mxu0 0
    %405 = vmatmul.mubr.bf16.gmra.mrb[0].mxu0 %v274
    %v406 = vpop.f32.mrb[0].mxu0
    %v407 = vadd.f32 %v299, %v406
    %v408 = vpop.f32.mrb[0].mxu0
    %v409 = vpop.f32.mrb[0].mxu0
    %v410 = vadd.f32 %v299, %v409
    %v411 = vpop.f32.mrb[0].mxu0
    %412 = vmatprep.mubr.bf16.mxu0 0
    %413 = vmatmul.mubr.bf16.gmra.mrb[0].mxu0 %v275
    %v414 = vpop.f32.mrb[0].mxu0
    %v415 = vadd.f32 %v299, %v414
    %v416 = vpop.f32.mrb[0].mxu0
    %v417 = vpop.f32.mrb[0].mxu0
    %v418 = vadd.f32 %v299, %v417
    %v419 = vpop.f32.mrb[0].mxu0
    %420 = vmatprep.mubr.bf16.mxu0 0
    %421 = vmatmul.mubr.bf16.gmra.mrb[0].mxu0 %v276
    %v422 = vpop.f32.mrb[0].mxu0
    %v423 = vadd.f32 %v299, %v422
    %v424 = vpop.f32.mrb[0].mxu0
    %v425 = vpop.f32.mrb[0].mxu0
    %v426 = vadd.f32 %v299, %v425
    %v427 = vpop.f32.mrb[0].mxu0
    %428 = vmatprep.mubr.bf16.mxu0 0
    %429 = vmatmul.mubr.bf16.gmra.mrb[0].mxu0 %v277
    %v430 = vpop.f32.mrb[0].mxu0
    %v431 = vadd.f32 %v299, %v430
    %v432 = vpop.f32.mrb[0].mxu0
    %v433 = vpop.f32.mrb[0].mxu0
    %v434 = vadd.f32 %v299, %v433
    %v435 = vpop.f32.mrb[0].mxu0
    %436 = vmatprep.mubr.bf16.mxu0 0
    %437 = vmatmul.mubr.bf16.gmra.mrb[0].mxu0 %v278
    %v438 = vpop.f32.mrb[0].mxu0
    %v439 = vadd.f32 %v299, %v438
    %v440 = vpop.f32.mrb[0].mxu0
    %v441 = vpop.f32.mrb[0].mxu0
    %v442 = vadd.f32 %v299, %v441
    %v443 = vpop.f32.mrb[0].mxu0
    %444 = vdwg.mxu0
    %v445 = vmax.f32 %v383, 0.0
    %v446 = vmax.f32 %v386, 0.0
    %v447 = vmax.f32 %v391, 0.0
    %v448 = vmax.f32 %v394, 0.0
    %v449 = vmax.f32 %v399, 0.0
    %v450 = vmax.f32 %v402, 0.0
    %v451 = vmax.f32 %v407, 0.0
    %v452 = vmax.f32 %v410, 0.0
    %v453 = vmax.f32 %v415, 0.0
    %v454 = vmax.f32 %v418, 0.0
    %v455 = vmax.f32 %v423, 0.0
    %v456 = vmax.f32 %v426, 0.0
    %v457 = vmax.f32 %v431, 0.0
    %v458 = vmax.f32 %v434, 0.0
    %v459 = vmax.f32 %v439, 0.0
    %v460 = vmax.f32 %v442, 0.0
    %v461 = vpack.c.bf16 %v446, %v445
    %v462 = vpack.c.bf16 %v448, %v447
    %v463 = vpack.c.bf16 %v450, %v449
    %v464 = vpack.c.bf16 %v452, %v451
    %v465 = vpack.c.bf16 %v454, %v453
    %v466 = vpack.c.bf16 %v456, %v455
    %v467 = vpack.c.bf16 %v458, %v457
    %v468 = vpack.c.bf16 %v460, %v459
    %469 = vmatprep.subr.bf16.mxu0 0
    %470 = vmatpush1.bf16.msra.mxu0 %v461
    %471 = vmatprep.subr.bf16.mxu0 0
    %472 = vmatpush1.bf16.msra.mxu0 %v462
    %473 = vmatprep.subr.bf16.mxu0 0
    %474 = vmatpush1.bf16.msra.mxu0 %v463
    %475 = vmatprep.subr.bf16.mxu0 0
    %476 = vmatpush1.bf16.msra.mxu0 %v464
    %477 = vmatprep.subr.bf16.mxu0 0
    %478 = vmatpush1.bf16.msra.mxu0 %v465
    %479 = vmatprep.subr.bf16.mxu0 0
    %480 = vmatpush1.bf16.msra.mxu0 %v466
    %481 = vmatprep.subr.bf16.mxu0 0
    %482 = vmatpush1.bf16.msra.mxu0 %v467
    %483 = vmatprep.subr.bf16.mxu0 0
    %484 = vmatpush1.bf16.msra.mxu0 %v468
    %485 = vmatprep.subr.bf16.mxu0 0
    %486 = vmatpush1.bf16.msra.mxu0 0
    %487 = vmatprep.subr.bf16.mxu0 0
    %488 = vmatpush1.bf16.msra.mxu0 0
    %489 = vmatprep.subr.bf16.mxu0 0
    %490 = vmatpush1.bf16.msra.mxu0 0
    %491 = vmatprep.subr.bf16.mxu0 0
    %492 = vmatpush1.bf16.msra.mxu0 0
    %493 = vmatprep.subr.bf16.mxu0 0
    %494 = vmatpush1.bf16.msra.mxu0 0
    %495 = vmatprep.subr.bf16.mxu0 0
    %496 = vmatpush1.bf16.msra.mxu0 0
    %497 = vmatprep.subr.bf16.mxu0 0
    %498 = vmatpush1.bf16.msra.mxu0 0
    %499 = vmatprep.subr.bf16.mxu0 0
    %500 = vmatpush1.bf16.msra.mxu0 0
    %501 = vmatprep.mubr.bf16.mxu0 0
    %502 = vmatmul.mubr.bf16.gmra.mrb[0].mxu0 %v158
    %v503 = vpop.f32.mrb[0].mxu0
    %v504 = vadd.f32 0.0, %v503
    %v505 = vpop.f32.mrb[0].mxu0
    %v506 = vpop.f32.mrb[0].mxu0
    %v507 = vadd.f32 0.0, %v506
    %v508 = vpop.f32.mrb[0].mxu0
    %509 = vmatprep.mubr.bf16.mxu0 0
    %510 = vmatmul.mubr.bf16.gmra.mrb[0].mxu0 %v159
    %v511 = vpop.f32.mrb[0].mxu0
    %v512 = vadd.f32 0.0, %v511
    %v513 = vpop.f32.mrb[0].mxu0
    %v514 = vpop.f32.mrb[0].mxu0
    %v515 = vadd.f32 0.0, %v514
    %v516 = vpop.f32.mrb[0].mxu0
    %517 = vmatprep.mubr.bf16.mxu0 0
    %518 = vmatmul.mubr.bf16.gmra.mrb[0].mxu0 %v160
    %v519 = vpop.f32.mrb[0].mxu0
    %v520 = vadd.f32 0.0, %v519
    %v521 = vpop.f32.mrb[0].mxu0
    %v522 = vpop.f32.mrb[0].mxu0
    %v523 = vadd.f32 0.0, %v522
    %v524 = vpop.f32.mrb[0].mxu0
    %525 = vmatprep.mubr.bf16.mxu0 0
    %526 = vmatmul.mubr.bf16.gmra.mrb[0].mxu0 %v161
    %v527 = vpop.f32.mrb[0].mxu0
    %v528 = vadd.f32 0.0, %v527
    %v529 = vpop.f32.mrb[0].mxu0
    %v530 = vpop.f32.mrb[0].mxu0
    %v531 = vadd.f32 0.0, %v530
    %v532 = vpop.f32.mrb[0].mxu0
    %533 = vmatprep.mubr.bf16.mxu0 0
    %534 = vmatmul.mubr.bf16.gmra.mrb[0].mxu0 %v162
    %v535 = vpop.f32.mrb[0].mxu0
    %v536 = vadd.f32 0.0, %v535
    %v537 = vpop.f32.mrb[0].mxu0
    %v538 = vpop.f32.mrb[0].mxu0
    %v539 = vadd.f32 0.0, %v538
    %v540 = vpop.f32.mrb[0].mxu0
    %541 = vmatprep.mubr.bf16.mxu0 0
    %542 = vmatmul.mubr.bf16.gmra.mrb[0].mxu0 %v163
    %v543 = vpop.f32.mrb[0].mxu0
    %v544 = vadd.f32 0.0, %v543
    %v545 = vpop.f32.mrb[0].mxu0
    %v546 = vpop.f32.mrb[0].mxu0
    %v547 = vadd.f32 0.0, %v546
    %v548 = vpop.f32.mrb[0].mxu0
    %549 = vmatprep.mubr.bf16.mxu0 0
    %550 = vmatmul.mubr.bf16.gmra.mrb[0].mxu0 %v164
    %v551 = vpop.f32.mrb[0].mxu0
    %v552 = vadd.f32 0.0, %v551
    %v553 = vpop.f32.mrb[0].mxu0
    %v554 = vpop.f32.mrb[0].mxu0
    %v555 = vadd.f32 0.0, %v554
    %v556 = vpop.f32.mrb[0].mxu0
    %557 = vmatprep.mubr.bf16.mxu0 0
    %558 = vmatmul.mubr.bf16.gmra.mrb[0].mxu0 %v165
    %v559 = vpop.f32.mrb[0].mxu0
    %v560 = vadd.f32 0.0, %v559
    %v561 = vpop.f32.mrb[0].mxu0
    %v562 = vpop.f32.mrb[0].mxu0
    %v563 = vadd.f32 0.0, %v562
    %v564 = vpop.f32.mrb[0].mxu0
    %565 = vdwg.mxu0
    %v566 = vpack.c.bf16 %v507, %v504
    %v567 = vpack.c.bf16 %v515, %v512
    %v568 = vpack.c.bf16 %v523, %v520
    %v569 = vpack.c.bf16 %v531, %v528
    %v570 = vpack.c.bf16 %v539, %v536
    %v571 = vpack.c.bf16 %v547, %v544
    %v572 = vpack.c.bf16 %v555, %v552
    %v573 = vpack.c.bf16 %v563, %v560
    %v574 = vld [vmem:[#allocation3 + $0x40] sm:$0xf]
    %v575 = vld [vmem:[#allocation3 + $0x44] sm:$0xf]
    %v576 = vld [vmem:[#allocation3 + $0x48] sm:$0xf]
    %v577 = vld [vmem:[#allocation3 + $0x4c] sm:$0xf]
    %v578 = vld [vmem:[#allocation3 + $0x50] sm:$0xf]
    %v579 = vld [vmem:[#allocation3 + $0x54] sm:$0xf]
    %v580 = vld [vmem:[#allocation3 + $0x58] sm:$0xf]
    %v581 = vld [vmem:[#allocation3 + $0x5c] sm:$0xf]
    %v582 = vld [vmem:[#allocation3 + $0x60] sm:$0xf]
    %v583 = vld [vmem:[#allocation3 + $0x64] sm:$0xf]
    %v584 = vld [vmem:[#allocation3 + $0x68] sm:$0xf]
    %v585 = vld [vmem:[#allocation3 + $0x6c] sm:$0xf]
    %v586 = vld [vmem:[#allocation3 + $0x70] sm:$0xf]
    %v587 = vld [vmem:[#allocation3 + $0x74] sm:$0xf]
    %v588 = vld [vmem:[#allocation3 + $0x78] sm:$0xf]
    %v589 = vld [vmem:[#allocation3 + $0x7c] sm:$0xf]
    %v590 = vld [vmem:[%s3 + $0x1] sm:$0x1]
    %v591 = vlaneseq
    %v592 = vshrl.u32 %v591, 7
    %v593 = vsub.s32 0, %v592
    %v594 = vrot.slane %v590, %v593
    %v611 = vunpack.c.l.b16 %v574
    %v612 = vunpack.c.l.b16 %v575
    %v613 = vunpack.c.l.b16 %v576
    %v614 = vunpack.c.l.b16 %v577
    %v615 = vunpack.c.l.b16 %v578
    %v616 = vunpack.c.l.b16 %v579
    %v617 = vunpack.c.l.b16 %v580
    %v618 = vunpack.c.l.b16 %v581
    %v619 = vunpack.c.l.b16 %v582
    %v620 = vunpack.c.l.b16 %v583
    %v621 = vunpack.c.l.b16 %v584
    %v622 = vunpack.c.l.b16 %v585
    %v623 = vunpack.c.l.b16 %v586
    %v624 = vunpack.c.l.b16 %v587
    %v625 = vunpack.c.l.b16 %v588
    %v626 = vunpack.c.l.b16 %v589
    %v627 = vpack.c.b16 %v612, %v611
    %v628 = vpack.c.b16 %v614, %v613
    %v629 = vpack.c.b16 %v616, %v615
    %v630 = vpack.c.b16 %v618, %v617
    %v631 = vpack.c.b16 %v620, %v619
    %v632 = vpack.c.b16 %v622, %v621
    %v633 = vpack.c.b16 %v624, %v623
    %v634 = vpack.c.b16 %v626, %v625
    %643 = vmatprep.subr.bf16.mxu0 0
    %644 = vmatpush1.bf16.msra.mxu0 %v627
    %645 = vmatprep.subr.bf16.mxu0 0
    %646 = vmatpush1.bf16.msra.mxu0 %v628
    %647 = vmatprep.subr.bf16.mxu0 0
    %648 = vmatpush1.bf16.msra.mxu0 %v629
    %649 = vmatprep.subr.bf16.mxu0 0
    %650 = vmatpush1.bf16.msra.mxu0 %v630
    %651 = vmatprep.subr.bf16.mxu0 0
    %652 = vmatpush1.bf16.msra.mxu0 %v631
    %653 = vmatprep.subr.bf16.mxu0 0
    %654 = vmatpush1.bf16.msra.mxu0 %v632
    %655 = vmatprep.subr.bf16.mxu0 0
    %656 = vmatpush1.bf16.msra.mxu0 %v633
    %657 = vmatprep.subr.bf16.mxu0 0
    %658 = vmatpush1.bf16.msra.mxu0 %v634
    %659 = vmatprep.subr.bf16.mxu0 0
    %660 = vmatpush1.bf16.msra.mxu0 0
    %661 = vmatprep.subr.bf16.mxu0 0
    %662 = vmatpush1.bf16.msra.mxu0 0
    %663 = vmatprep.subr.bf16.mxu0 0
    %664 = vmatpush1.bf16.msra.mxu0 0
    %665 = vmatprep.subr.bf16.mxu0 0
    %666 = vmatpush1.bf16.msra.mxu0 0
    %667 = vmatprep.subr.bf16.mxu0 0
    %668 = vmatpush1.bf16.msra.mxu0 0
    %669 = vmatprep.subr.bf16.mxu0 0
    %670 = vmatpush1.bf16.msra.mxu0 0
    %671 = vmatprep.subr.bf16.mxu0 0
    %672 = vmatpush1.bf16.msra.mxu0 0
    %673 = vmatprep.subr.bf16.mxu0 0
    %674 = vmatpush1.bf16.msra.mxu0 0
    %675 = vmatprep.mubr.bf16.mxu0 0
    %676 = vmatmul.mubr.bf16.gmra.mrb[0].mxu0 %v566
    %v677 = vpop.f32.mrb[0].mxu0
    %v678 = vadd.f32 %v594, %v677
    %v679 = vpop.f32.mrb[0].mxu0
    %v680 = vpop.f32.mrb[0].mxu0
    %v681 = vadd.f32 %v594, %v680
    %v682 = vpop.f32.mrb[0].mxu0
    %683 = vmatprep.mubr.bf16.mxu0 0
    %684 = vmatmul.mubr.bf16.gmra.mrb[0].mxu0 %v567
    %v685 = vpop.f32.mrb[0].mxu0
    %v686 = vadd.f32 %v594, %v685
    %v687 = vpop.f32.mrb[0].mxu0
    %v688 = vpop.f32.mrb[0].mxu0
    %v689 = vadd.f32 %v594, %v688
    %v690 = vpop.f32.mrb[0].mxu0
    %691 = vmatprep.mubr.bf16.mxu0 0
    %692 = vmatmul.mubr.bf16.gmra.mrb[0].mxu0 %v568
    %v693 = vpop.f32.mrb[0].mxu0
    %v694 = vadd.f32 %v594, %v693
    %v695 = vpop.f32.mrb[0].mxu0
    %v696 = vpop.f32.mrb[0].mxu0
    %v697 = vadd.f32 %v594, %v696
    %v698 = vpop.f32.mrb[0].mxu0
    %699 = vmatprep.mubr.bf16.mxu0 0
    %700 = vmatmul.mubr.bf16.gmra.mrb[0].mxu0 %v569
    %v701 = vpop.f32.mrb[0].mxu0
    %v702 = vadd.f32 %v594, %v701
    %v703 = vpop.f32.mrb[0].mxu0
    %v704 = vpop.f32.mrb[0].mxu0
    %v705 = vadd.f32 %v594, %v704
    %v706 = vpop.f32.mrb[0].mxu0
    %707 = vmatprep.mubr.bf16.mxu0 0
    %708 = vmatmul.mubr.bf16.gmra.mrb[0].mxu0 %v570
    %v709 = vpop.f32.mrb[0].mxu0
    %v710 = vadd.f32 %v594, %v709
    %v711 = vpop.f32.mrb[0].mxu0
    %v712 = vpop.f32.mrb[0].mxu0
    %v713 = vadd.f32 %v594, %v712
    %v714 = vpop.f32.mrb[0].mxu0
    %715 = vmatprep.mubr.bf16.mxu0 0
    %716 = vmatmul.mubr.bf16.gmra.mrb[0].mxu0 %v571
    %v717 = vpop.f32.mrb[0].mxu0
    %v718 = vadd.f32 %v594, %v717
    %v719 = vpop.f32.mrb[0].mxu0
    %v720 = vpop.f32.mrb[0].mxu0
    %v721 = vadd.f32 %v594, %v720
    %v722 = vpop.f32.mrb[0].mxu0
    %723 = vmatprep.mubr.bf16.mxu0 0
    %724 = vmatmul.mubr.bf16.gmra.mrb[0].mxu0 %v572
    %v725 = vpop.f32.mrb[0].mxu0
    %v726 = vadd.f32 %v594, %v725
    %v727 = vpop.f32.mrb[0].mxu0
    %v728 = vpop.f32.mrb[0].mxu0
    %v729 = vadd.f32 %v594, %v728
    %v730 = vpop.f32.mrb[0].mxu0
    %731 = vmatprep.mubr.bf16.mxu0 0
    %732 = vmatmul.mubr.bf16.gmra.mrb[0].mxu0 %v573
    %v733 = vpop.f32.mrb[0].mxu0
    %v734 = vadd.f32 %v594, %v733
    %v735 = vpop.f32.mrb[0].mxu0
    %v736 = vpop.f32.mrb[0].mxu0
    %v737 = vadd.f32 %v594, %v736
    %v738 = vpop.f32.mrb[0].mxu0
    %739 = vdwg.mxu0
    %v740 = vadd.f32 %v678, %v681
    %v741 = vrot.slane %v740, 4
    %v742 = vadd.f32 %v740, %v741
    %v743 = vrot.slane %v742, 2
    %v744 = vadd.f32 %v742, %v743
    %v745 = vrot.slane %v744, 1
    %v746 = vadd.f32 %v744, %v745
    %v747 = vadd.f32 %v686, %v689
    %v748 = vrot.slane %v747, 4
    %v749 = vadd.f32 %v747, %v748
    %v750 = vrot.slane %v749, 2
    %v751 = vadd.f32 %v749, %v750
    %v752 = vrot.slane %v751, 1
    %v753 = vadd.f32 %v751, %v752
    %v754 = vadd.f32 %v694, %v697
    %v755 = vrot.slane %v754, 4
    %v756 = vadd.f32 %v754, %v755
    %v757 = vrot.slane %v756, 2
    %v758 = vadd.f32 %v756, %v757
    %v759 = vrot.slane %v758, 1
    %v760 = vadd.f32 %v758, %v759
    %v761 = vadd.f32 %v702, %v705
    %v762 = vrot.slane %v761, 4
    %v763 = vadd.f32 %v761, %v762
    %v764 = vrot.slane %v763, 2
    %v765 = vadd.f32 %v763, %v764
    %v766 = vrot.slane %v765, 1
    %v767 = vadd.f32 %v765, %v766
    %v768 = vadd.f32 %v710, %v713
    %v769 = vrot.slane %v768, 4
    %v770 = vadd.f32 %v768, %v769
    %v771 = vrot.slane %v770, 2
    %v772 = vadd.f32 %v770, %v771
    %v773 = vrot.slane %v772, 1
    %v774 = vadd.f32 %v772, %v773
    %v775 = vadd.f32 %v718, %v721
    %v776 = vrot.slane %v775, 4
    %v777 = vadd.f32 %v775, %v776
    %v778 = vrot.slane %v777, 2
    %v779 = vadd.f32 %v777, %v778
    %v780 = vrot.slane %v779, 1
    %v781 = vadd.f32 %v779, %v780
    %v782 = vadd.f32 %v726, %v729
    %v783 = vrot.slane %v782, 4
    %v784 = vadd.f32 %v782, %v783
    %v785 = vrot.slane %v784, 2
    %v786 = vadd.f32 %v784, %v785
    %v787 = vrot.slane %v786, 1
    %v788 = vadd.f32 %v786, %v787
    %v789 = vadd.f32 %v734, %v737
    %v790 = vrot.slane %v789, 4
    %v791 = vadd.f32 %v789, %v790
    %v792 = vrot.slane %v791, 2
    %v793 = vadd.f32 %v791, %v792
    %v794 = vrot.slane %v793, 1
    %v795 = vadd.f32 %v793, %v794
    %v796 = vrcp.pop 16.0
    %v797 = vmul.f32 %v746, %v796
    %v798 = vmul.f32 %v753, %v796
    %v799 = vmul.f32 %v760, %v796
    %v800 = vmul.f32 %v767, %v796
    %v801 = vmul.f32 %v774, %v796
    %v802 = vmul.f32 %v781, %v796
    %v803 = vmul.f32 %v788, %v796
    %v804 = vmul.f32 %v795, %v796
    %v805 = vpack.c.bf16 %v797, %v797
    %v806 = vpack.c.bf16 %v798, %v798
    %v807 = vpack.c.bf16 %v799, %v799
    %v808 = vpack.c.bf16 %v800, %v800
    %v809 = vpack.c.bf16 %v801, %v801
    %v810 = vpack.c.bf16 %v802, %v802
    %v811 = vpack.c.bf16 %v803, %v803
    %v812 = vpack.c.bf16 %v804, %v804
    %v813 = vld [vmem:[#allocation3 + $0x80] sm:$0xf]
    %v814 = vld [vmem:[#allocation3 + $0x84] sm:$0xf]
    %v815 = vld [vmem:[#allocation3 + $0x88] sm:$0xf]
    %v816 = vld [vmem:[#allocation3 + $0x8c] sm:$0xf]
    %v817 = vld [vmem:[#allocation3 + $0x90] sm:$0xf]
    %v818 = vld [vmem:[#allocation3 + $0x94] sm:$0xf]
    %v819 = vld [vmem:[#allocation3 + $0x98] sm:$0xf]
    %v820 = vld [vmem:[#allocation3 + $0x9c] sm:$0xf]
    %v821 = vld [vmem:[#allocation3 + $0xa0] sm:$0xf]
    %v822 = vld [vmem:[#allocation3 + $0xa4] sm:$0xf]
    %v823 = vld [vmem:[#allocation3 + $0xa8] sm:$0xf]
    %v824 = vld [vmem:[#allocation3 + $0xac] sm:$0xf]
    %v825 = vld [vmem:[#allocation3 + $0xb0] sm:$0xf]
    %v826 = vld [vmem:[#allocation3 + $0xb4] sm:$0xf]
    %v827 = vld [vmem:[#allocation3 + $0xb8] sm:$0xf]
    %v828 = vld [vmem:[#allocation3 + $0xbc] sm:$0xf]
    %v829 = vld [vmem:[%s3 + $0x2] sm:$0x1]
    %v830 = vlaneseq
    %v831 = vshrl.u32 %v830, 7
    %v832 = vsub.s32 0, %v831
    %v833 = vrot.slane %v829, %v832
    %v842 = vunpack.c.l.b16 %v805
    %v843 = vunpack.c.l.b16 %v806
    %v844 = vunpack.c.l.b16 %v807
    %v845 = vunpack.c.l.b16 %v808
    %v846 = vunpack.c.l.b16 %v809
    %v847 = vunpack.c.l.b16 %v810
    %v848 = vunpack.c.l.b16 %v811
    %v849 = vunpack.c.l.b16 %v812
    %vm850 = vcmask 1041409
    %v851 = vsel %vm850, %v843, %v842
    %vm852 = vcmask 1042434
    %v853 = vsel %vm852, %v844, %v851
    %vm854 = vcmask 1043459
    %v855 = vsel %vm854, %v845, %v853
    %vm856 = vcmask 1044484
    %v857 = vsel %vm856, %v846, %v855
    %vm858 = vcmask 1045509
    %v859 = vsel %vm858, %v847, %v857
    %vm860 = vcmask 1046534
    %v861 = vsel %vm860, %v848, %v859
    %vm862 = vcmask 1047559
    %v863 = vsel %vm862, %v849, %v861
    %v864 = vpack.c.b16 %v863, %v863
    %v882 = vunpack.c.l.b16 %v813
    %v883 = vunpack.c.l.b16 %v814
    %v884 = vunpack.c.l.b16 %v815
    %v885 = vunpack.c.l.b16 %v816
    %v886 = vunpack.c.l.b16 %v817
    %v887 = vunpack.c.l.b16 %v818
    %v888 = vunpack.c.l.b16 %v819
    %v889 = vunpack.c.l.b16 %v820
    %v890 = vunpack.c.l.b16 %v821
    %v891 = vunpack.c.l.b16 %v822
    %v892 = vunpack.c.l.b16 %v823
    %v893 = vunpack.c.l.b16 %v824
    %v894 = vunpack.c.l.b16 %v825
    %v895 = vunpack.c.l.b16 %v826
    %v896 = vunpack.c.l.b16 %v827
    %v897 = vunpack.c.l.b16 %v828
    %v898 = vpack.c.b16 %v883, %v882
    %v899 = vpack.c.b16 %v885, %v884
    %v900 = vpack.c.b16 %v887, %v886
    %v901 = vpack.c.b16 %v889, %v888
    %v902 = vpack.c.b16 %v891, %v890
    %v903 = vpack.c.b16 %v893, %v892
    %v904 = vpack.c.b16 %v895, %v894
    %v905 = vpack.c.b16 %v897, %v896
    %914 = vmatprep.subr.bf16.mxu0 0
    %915 = vmatpush1.bf16.msra.mxu0 %v898
    %916 = vmatprep.subr.bf16.mxu0 0
    %917 = vmatpush1.bf16.msra.mxu0 %v899
    %918 = vmatprep.subr.bf16.mxu0 0
    %919 = vmatpush1.bf16.msra.mxu0 %v900
    %920 = vmatprep.subr.bf16.mxu0 0
    %921 = vmatpush1.bf16.msra.mxu0 %v901
    %922 = vmatprep.subr.bf16.mxu0 0
    %923 = vmatpush1.bf16.msra.mxu0 %v902
    %924 = vmatprep.subr.bf16.mxu0 0
    %925 = vmatpush1.bf16.msra.mxu0 %v903
    %926 = vmatprep.subr.bf16.mxu0 0
    %927 = vmatpush1.bf16.msra.mxu0 %v904
    %928 = vmatprep.subr.bf16.mxu0 0
    %929 = vmatpush1.bf16.msra.mxu0 %v905
    %930 = vmatprep.subr.bf16.mxu0 0
    %931 = vmatpush1.bf16.msra.mxu0 0
    %932 = vmatprep.subr.bf16.mxu0 0
    %933 = vmatpush1.bf16.msra.mxu0 0
    %934 = vmatprep.subr.bf16.mxu0 0
    %935 = vmatpush1.bf16.msra.mxu0 0
    %936 = vmatprep.subr.bf16.mxu0 0
    %937 = vmatpush1.bf16.msra.mxu0 0
    %938 = vmatprep.subr.bf16.mxu0 0
    %939 = vmatpush1.bf16.msra.mxu0 0
    %940 = vmatprep.subr.bf16.mxu0 0
    %941 = vmatpush1.bf16.msra.mxu0 0
    %942 = vmatprep.subr.bf16.mxu0 0
    %943 = vmatpush1.bf16.msra.mxu0 0
    %944 = vmatprep.subr.bf16.mxu0 0
    %945 = vmatpush1.bf16.msra.mxu0 0
    %946 = vmatprep.mubr.bf16.mxu0 0
    %947 = vmatmul.mubr.bf16.gmra.mrb[0].mxu0 %v864
    %v948 = vpop.f32.mrb[0].mxu0
    %v949 = vadd.f32 %v833, %v948
    %v950 = vpop.f32.mrb[0].mxu0
    %v951 = vpop.f32.mrb[0].mxu0
    %v952 = vpop.f32.mrb[0].mxu0
    %953 = vdwg.mxu0
    %v954 = vmax.f32 %v949, 0.0
    %v955 = vpack.c.bf16 %v954, %v954
    %v956 = vld [vmem:[#allocation3 + $0xc0] sm:$0xf]
    %v957 = vld [vmem:[#allocation3 + $0xc4] sm:$0xf]
    %v958 = vld [vmem:[#allocation3 + $0xc8] sm:$0xf]
    %v959 = vld [vmem:[#allocation3 + $0xcc] sm:$0xf]
    %v960 = vld [vmem:[#allocation3 + $0xd0] sm:$0xf]
    %v961 = vld [vmem:[#allocation3 + $0xd4] sm:$0xf]
    %v962 = vld [vmem:[#allocation3 + $0xd8] sm:$0xf]
    %v963 = vld [vmem:[#allocation3 + $0xdc] sm:$0xf]
    %v964 = vld [vmem:[#allocation3 + $0xe0] sm:$0xf]
    %v965 = vld [vmem:[#allocation3 + $0xe4] sm:$0xf]
    %v966 = vld [vmem:[#allocation3 + $0xe8] sm:$0xf]
    %v967 = vld [vmem:[#allocation3 + $0xec] sm:$0xf]
    %v968 = vld [vmem:[#allocation3 + $0xf0] sm:$0xf]
    %v969 = vld [vmem:[#allocation3 + $0xf4] sm:$0xf]
    %v970 = vld [vmem:[#allocation3 + $0xf8] sm:$0xf]
    %v971 = vld [vmem:[#allocation3 + $0xfc] sm:$0xf]
    %v972 = vld [vmem:[%s3 + $0x3] sm:$0x1]
    %v973 = vlaneseq
    %v974 = vshrl.u32 %v973, 7
    %v975 = vsub.s32 0, %v974
    %v976 = vrot.slane %v972, %v975
    %v993 = vunpack.c.l.b16 %v956
    %v994 = vunpack.c.l.b16 %v957
    %v995 = vunpack.c.l.b16 %v958
    %v996 = vunpack.c.l.b16 %v959
    %v997 = vunpack.c.l.b16 %v960
    %v998 = vunpack.c.l.b16 %v961
    %v999 = vunpack.c.l.b16 %v962
    %v1000 = vunpack.c.l.b16 %v963
    %v1001 = vunpack.c.l.b16 %v964
    %v1002 = vunpack.c.l.b16 %v965
    %v1003 = vunpack.c.l.b16 %v966
    %v1004 = vunpack.c.l.b16 %v967
    %v1005 = vunpack.c.l.b16 %v968
    %v1006 = vunpack.c.l.b16 %v969
    %v1007 = vunpack.c.l.b16 %v970
    %v1008 = vunpack.c.l.b16 %v971
    %v1009 = vpack.c.b16 %v994, %v993
    %v1010 = vpack.c.b16 %v996, %v995
    %v1011 = vpack.c.b16 %v998, %v997
    %v1012 = vpack.c.b16 %v1000, %v999
    %v1013 = vpack.c.b16 %v1002, %v1001
    %v1014 = vpack.c.b16 %v1004, %v1003
    %v1015 = vpack.c.b16 %v1006, %v1005
    %v1016 = vpack.c.b16 %v1008, %v1007
    %1025 = vmatprep.subr.bf16.mxu0 0
    %1026 = vmatpush1.bf16.msra.mxu0 %v1009
    %1027 = vmatprep.subr.bf16.mxu0 0
    %1028 = vmatpush1.bf16.msra.mxu0 %v1010
    %1029 = vmatprep.subr.bf16.mxu0 0
    %1030 = vmatpush1.bf16.msra.mxu0 %v1011
    %1031 = vmatprep.subr.bf16.mxu0 0
    %1032 = vmatpush1.bf16.msra.mxu0 %v1012
    %1033 = vmatprep.subr.bf16.mxu0 0
    %1034 = vmatpush1.bf16.msra.mxu0 %v1013
    %1035 = vmatprep.subr.bf16.mxu0 0
    %1036 = vmatpush1.bf16.msra.mxu0 %v1014
    %1037 = vmatprep.subr.bf16.mxu0 0
    %1038 = vmatpush1.bf16.msra.mxu0 %v1015
    %1039 = vmatprep.subr.bf16.mxu0 0
    %1040 = vmatpush1.bf16.msra.mxu0 %v1016
    %1041 = vmatprep.subr.bf16.mxu0 0
    %1042 = vmatpush1.bf16.msra.mxu0 0
    %1043 = vmatprep.subr.bf16.mxu0 0
    %1044 = vmatpush1.bf16.msra.mxu0 0
    %1045 = vmatprep.subr.bf16.mxu0 0
    %1046 = vmatpush1.bf16.msra.mxu0 0
    %1047 = vmatprep.subr.bf16.mxu0 0
    %1048 = vmatpush1.bf16.msra.mxu0 0
    %1049 = vmatprep.subr.bf16.mxu0 0
    %1050 = vmatpush1.bf16.msra.mxu0 0
    %1051 = vmatprep.subr.bf16.mxu0 0
    %1052 = vmatpush1.bf16.msra.mxu0 0
    %1053 = vmatprep.subr.bf16.mxu0 0
    %1054 = vmatpush1.bf16.msra.mxu0 0
    %1055 = vmatprep.subr.bf16.mxu0 0
    %1056 = vmatpush1.bf16.msra.mxu0 0
    %1057 = vmatprep.mubr.bf16.mxu0 0
    %1058 = vmatmul.mubr.bf16.gmra.mrb[0].mxu0 %v955
    %v1059 = vpop.f32.mrb[0].mxu0
    %v1060 = vadd.f32 %v976, %v1059
    %v1061 = vpop.f32.mrb[0].mxu0
    %v1062 = vpop.f32.mrb[0].mxu0
    %v1063 = vpop.f32.mrb[0].mxu0
    %1064 = vdwg.mxu0
    %v1065 = vmax.f32 %v1060, 0.0
    %v1066 = vpack.c.bf16 %v1065, %v1065
    %v1067 = vld [vmem:[#allocation3 + $0x100] sm:$0xf]
    %v1068 = vld [vmem:[#allocation3 + $0x104] sm:$0xf]
    %v1069 = vld [vmem:[#allocation3 + $0x108] sm:$0xf]
    %v1070 = vld [vmem:[#allocation3 + $0x10c] sm:$0xf]
    %v1071 = vld [vmem:[#allocation3 + $0x110] sm:$0xf]
    %v1072 = vld [vmem:[#allocation3 + $0x114] sm:$0xf]
    %v1073 = vld [vmem:[#allocation3 + $0x118] sm:$0xf]
    %v1074 = vld [vmem:[#allocation3 + $0x11c] sm:$0xf]
    %v1075 = vld [vmem:[#allocation3 + $0x120] sm:$0xf]
    %v1076 = vld [vmem:[#allocation3 + $0x124] sm:$0xf]
    %v1077 = vld [vmem:[#allocation3 + $0x128] sm:$0xf]
    %v1078 = vld [vmem:[#allocation3 + $0x12c] sm:$0xf]
    %v1079 = vld [vmem:[#allocation3 + $0x130] sm:$0xf]
    %v1080 = vld [vmem:[#allocation3 + $0x134] sm:$0xf]
    %v1081 = vld [vmem:[#allocation3 + $0x138] sm:$0xf]
    %v1082 = vld [vmem:[#allocation3 + $0x13c] sm:$0xf]
    %v1083 = vld [vmem:[%s3 + $0x4] sm:$0x1]
    %v1084 = vlaneseq
    %v1085 = vshrl.u32 %v1084, 7
    %v1086 = vsub.s32 0, %v1085
    %v1087 = vrot.slane %v1083, %v1086
    %v1104 = vunpack.c.l.b16 %v1067
    %v1105 = vunpack.c.l.b16 %v1068
    %v1106 = vunpack.c.l.b16 %v1069
    %v1107 = vunpack.c.l.b16 %v1070
    %v1108 = vunpack.c.l.b16 %v1071
    %v1109 = vunpack.c.l.b16 %v1072
    %v1110 = vunpack.c.l.b16 %v1073
    %v1111 = vunpack.c.l.b16 %v1074
    %v1112 = vunpack.c.l.b16 %v1075
    %v1113 = vunpack.c.l.b16 %v1076
    %v1114 = vunpack.c.l.b16 %v1077
    %v1115 = vunpack.c.l.b16 %v1078
    %v1116 = vunpack.c.l.b16 %v1079
    %v1117 = vunpack.c.l.b16 %v1080
    %v1118 = vunpack.c.l.b16 %v1081
    %v1119 = vunpack.c.l.b16 %v1082
    %v1120 = vpack.c.b16 %v1105, %v1104
    %v1121 = vpack.c.b16 %v1107, %v1106
    %v1122 = vpack.c.b16 %v1109, %v1108
    %v1123 = vpack.c.b16 %v1111, %v1110
    %v1124 = vpack.c.b16 %v1113, %v1112
    %v1125 = vpack.c.b16 %v1115, %v1114
    %v1126 = vpack.c.b16 %v1117, %v1116
    %v1127 = vpack.c.b16 %v1119, %v1118
    %1136 = vmatprep.subr.bf16.mxu0 0
    %1137 = vmatpush1.bf16.msra.mxu0 %v1120
    %1138 = vmatprep.subr.bf16.mxu0 0
    %1139 = vmatpush1.bf16.msra.mxu0 %v1121
    %1140 = vmatprep.subr.bf16.mxu0 0
    %1141 = vmatpush1.bf16.msra.mxu0 %v1122
    %1142 = vmatprep.subr.bf16.mxu0 0
    %1143 = vmatpush1.bf16.msra.mxu0 %v1123
    %1144 = vmatprep.subr.bf16.mxu0 0
    %1145 = vmatpush1.bf16.msra.mxu0 %v1124
    %1146 = vmatprep.subr.bf16.mxu0 0
    %1147 = vmatpush1.bf16.msra.mxu0 %v1125
    %1148 = vmatprep.subr.bf16.mxu0 0
    %1149 = vmatpush1.bf16.msra.mxu0 %v1126
    %1150 = vmatprep.subr.bf16.mxu0 0
    %1151 = vmatpush1.bf16.msra.mxu0 %v1127
    %1152 = vmatprep.subr.bf16.mxu0 0
    %1153 = vmatpush1.bf16.msra.mxu0 0
    %1154 = vmatprep.subr.bf16.mxu0 0
    %1155 = vmatpush1.bf16.msra.mxu0 0
    %1156 = vmatprep.subr.bf16.mxu0 0
    %1157 = vmatpush1.bf16.msra.mxu0 0
    %1158 = vmatprep.subr.bf16.mxu0 0
    %1159 = vmatpush1.bf16.msra.mxu0 0
    %1160 = vmatprep.subr.bf16.mxu0 0
    %1161 = vmatpush1.bf16.msra.mxu0 0
    %1162 = vmatprep.subr.bf16.mxu0 0
    %1163 = vmatpush1.bf16.msra.mxu0 0
    %1164 = vmatprep.subr.bf16.mxu0 0
    %1165 = vmatpush1.bf16.msra.mxu0 0
    %1166 = vmatprep.subr.bf16.mxu0 0
    %1167 = vmatpush1.bf16.msra.mxu0 0
    %1168 = vmatprep.mubr.bf16.mxu0 0
    %1169 = vmatmul.mubr.bf16.gmra.mrb[0].mxu0 %v1066
    %v1170 = vpop.f32.mrb[0].mxu0
    %v1171 = vadd.f32 %v1087, %v1170
    %v1172 = vpop.f32.mrb[0].mxu0
    %v1173 = vpop.f32.mrb[0].mxu0
    %v1174 = vpop.f32.mrb[0].mxu0
    %1175 = vdwg.mxu0
    %v1176 = vlaneseq
    %v1177 = vand.u32 %v1176, 127
    %vm1178 = vcmp.lt.s32.totalorder %v1177, 16
    %v1179 = vsel %vm1178, %v1171, -inf
    %1180 = vmax.xlane.f32.xlu0 %v1179
    %v1181 = vpop.xlane.xlu0 %1180
    %v1182 = vsub.f32 %v1179, %v1181
    %v1183 = vmul.f32 %v1182, 1.442695
    %v1184 = vpow.pop %v1183
    %1185 = vadd.xlane.f32.xlu0 %v1184
    %v1186 = vpop.xlane.xlu0 %1185
    %v1187 = vlog2.pop %v1186
    %v1188 = vmul.f32 %v1187, 0.6931472
    %v1189 = vadd.f32 %v1188, %v1181
    %v1190 = vsub.f32 %v1171, %v1189
    %vm1191 = vcmp.eq.s32.totalorder %v1177, 16
    %v1192 = vsel %vm1191, %v1171, 0.0
    %1193 = vadd.xlane.f32.xlu0 %v1192
    %v1194 = vpop.xlane.xlu0 %1193
    %v1195 = vtanh.pop %v1194
    %v1196 = vsel %vm1191, %v1195, 0.0
    %v1197 = vsel %vm1178, %v1190, %v1196
    %1198 = vst [vmem:[#allocation6] sm:$0xff] %v1197
    // Predicated region
    $region26: #{tpu_custom_call.1} parent=1 // pred_check
      _
    $region27: #{tpu_custom_call.1} parent=1 // pred_check_branch
      %1200 = sbr.rel (0) target = $region29
    $region28: #{tpu_custom_call.1} parent=1 // pred_region
      %s1202 = ssub.s32 128, 128
      %1203 = vsyncadd [#allocation5], %s1202
      %s1205 = sshll.u32 [#allocation6], 4
      %s1206 = int_to_ptr.vmem [resolvable:$true] %s1205
      %1208 = dma.vmem_to_hbm [thread:$0]  %s1206, 128, %s4, [#allocation5]
    $region29: #{tpu_custom_call.1} parent=1 // pred_fallthru
      _
    // Predicated region
    $region30: #{tpu_custom_call.1} parent=1 // pred_check
      _
    $region31: #{tpu_custom_call.1} parent=1 // pred_check_branch
      %1210 = sbr.rel (0) target = $region33
    $region32: #{tpu_custom_call.1} parent=1 // pred_region
      %1211 = dma.done [#allocation5], 128
    $region33: #{tpu_custom_call.1} parent=1 // pred_fallthru
      _
    %1212 = vsyncpa [#allocation4], 1
    %1213 = vsyncpa [#allocation5], 1

</llo_original>
